<compile_context>
chip_gen: v6e
topology: v6e:2x2x1
jax: 0.10.0
libtpu: 0.0.40
codegen_flags: <defaults>
</compile_context>

<pallas_src>
import functools

import jax
import jax.numpy as jnp
from jax import lax
from jax.experimental import pallas as pl
from jax.experimental.pallas import tpu as pltpu


def _round_up(v, m):
    return ((v + m - 1) // m) * m


def _fused_causal_conv_kernel(halo_ref, x_ref, w1_ref, b1_ref, w2_ref, b2_ref,
                              o_ref, xw_ref, hw_ref, *,
                              kernel_size, dilation, pad, h0, h1, chunk,
                              l_tile, c_in, c_out):
    # halo_ref: (1, 1, c_in, h0)        x columns [j*l_tile - h0, j*l_tile), zeros where pos < 0
    # x_ref   : (1, c_in, l_tile)       x columns [j*l_tile, (j+1)*l_tile)
    # w1_ref  : (c_mid_p, K*c_in_p)     tap-stacked layer-1 weights
    # b1_ref  : (c_mid_p, 1)
    # w2_ref  : (c_out_p, K*c_mid_p)    tap-stacked layer-2 weights
    # b2_ref  : (c_out_p, 1)
    # o_ref   : (1, c_out, l_tile)
    # xw_ref  : (c_in_p, h0 + l_tile)   VMEM: [input halo | input tile]
    # hw_ref  : (c_mid_p, h1 + l_tile)  VMEM: layer-1 activations incl. recomputed halo
    j = pl.program_id(1)
    c_in_p = xw_ref.shape[0]
    c_mid_p = hw_ref.shape[0]

    # Zero the channel-padding rows so the tap-stacked matmul sees finite zeros
    # (scratch VMEM is uninitialized).
    if c_in_p != c_in:
        xw_ref[c_in:, :] = jnp.zeros((c_in_p - c_in, h0 + l_tile), jnp.float32)

    # Assemble the extended input window with two lane-aligned stores
    # (h0 is a multiple of 128).  All per-tap slices below read from this ref,
    # avoiding register-resident concat + unaligned relayouts of the tile.
    xw_ref[:c_in, :h0] = halo_ref[0, 0]
    xw_ref[:c_in, h0:] = x_ref[0]

    w1 = w1_ref[...]
    b1 = b1_ref[...]
    w2 = w2_ref[...]
    b2 = b2_ref[...]

    d = dilation
    # ---- layer 1 (overlap-save): positions [j*l_tile - h1, (j+1)*l_tile) ----
    base1 = h0 - h1 - pad                      # >= 0 by construction
    n1 = (h1 + l_tile) // chunk
    for i in range(n1):
        off = base1 + i * chunk
        if kernel_size > 1:
            xs = jnp.concatenate(
                [xw_ref[:, off + t * d: off + t * d + chunk]
                 for t in range(kernel_size)], axis=0)
        else:
            xs = xw_ref[:, off: off + chunk]
        h = jnp.dot(w1, xs, preferred_element_type=jnp.float32) + b1
        hw_ref[:, i * chunk:(i + 1) * chunk] = h

    # ZeroPad1d semantics for layer 2: its left padding is exactly zero for
    # sequence positions < 0 (NOT conv1 of zero-padded x, which carries b1).
    @pl.when(j == 0)
    def _():
        hw_ref[:, :h1] = jnp.zeros((c_mid_p, h1), jnp.float32)

    # ---- layer 2 on the VMEM-resident intermediate (no HBM round-trip) ----
    base2 = h1 - pad                           # >= 0 by construction
    n2 = l_tile // chunk
    for i in range(n2):
        off = base2 + i * chunk
        if kernel_size > 1:
            hs = jnp.concatenate(
                [hw_ref[:, off + t * d: off + t * d + chunk]
                 for t in range(kernel_size)], axis=0)
        else:
            hs = hw_ref[:, off: off + chunk]
        y = jnp.dot(w2, hs, preferred_element_type=jnp.float32) + b2
        o_ref[0, :, i * chunk:(i + 1) * chunk] = y[:c_out].astype(o_ref.dtype)


def fused_causal_conv_stack(x, w1, b1, w2, b2, *, dilation,
                            l_tile_target=2048, chunk=256):
    """Equivalent to two stacked [ZeroPad1d((K-1)*d, 0) -> Conv1d(dilation=d)].

    x : (N, C_in, L) float32
    w1: (C_mid, C_in, K), b1: (C_mid,)
    w2: (C_out, C_mid, K), b2: (C_out,)
    Returns (N, C_out, L).
    """
    n, c_in, L = x.shape
    c_mid, c_in_w, k = w1.shape
    c_out, c_mid_w, k2 = w2.shape
    assert c_in == c_in_w and c_mid == c_mid_w and k == k2
    pad = (k - 1) * dilation

    # Aligned halo widths: h1 = layer-1 columns recomputed per tile (multiple of
    # `chunk` so the chunk loop stays aligned), h0 = input halo (multiple of 128
    # so the halo store into the VMEM window is lane-aligned).
    h1 = max(chunk, _round_up(max(pad, 1), chunk))
    h0 = _round_up(h1 + pad, 128)

    # Lane-dense L tiling: l_tile is a multiple of `chunk` (>= 256).
    n_t_min = pl.cdiv(L, l_tile_target)
    l_tile = _round_up(pl.cdiv(L, n_t_min), chunk)
    n_tiles = pl.cdiv(L, l_tile)
    l_padded = n_tiles * l_tile
    if n_tiles > 1:
        assert l_tile >= h1, "tile must cover the recomputed layer-1 halo"

    x_in = x if l_padded == L else jnp.pad(x, ((0, 0), (0, 0), (0, l_padded - L)))

    # Per-tile input halo (overlap-save): tile j gets x columns
    # [j*l_tile - h0, j*l_tile), zeros where the position is negative.
    if n_tiles == 1:
        halo = jnp.zeros((n, 1, c_in, h0), x.dtype)
    else:
        x_lp = jnp.pad(x_in, ((0, 0), (0, 0), (h0, 0)))
        cols = jnp.arange(n_tiles)[:, None] * l_tile + jnp.arange(h0)[None, :]
        halo = jnp.transpose(jnp.take(x_lp, cols, axis=2), (0, 2, 1, 3))

    # Channel padding to sublane multiples (weights/bias only) and tap-stacked
    # ("im2col over taps") weight layout: column index = t*C_pad + c.
    c_in_p = _round_up(c_in, 8)
    c_mid_p = _round_up(c_mid, 8)
    c_out_p = _round_up(c_out, 8)
    w1_p = jnp.pad(w1, ((0, c_mid_p - c_mid), (0, c_in_p - c_in), (0, 0)))
    w2_p = jnp.pad(w2, ((0, c_out_p - c_out), (0, c_mid_p - c_mid), (0, 0)))
    w1_flat = jnp.transpose(w1_p, (0, 2, 1)).reshape(c_mid_p, k * c_in_p)
    w2_flat = jnp.transpose(w2_p, (0, 2, 1)).reshape(c_out_p, k * c_mid_p)
    b1_2d = jnp.pad(b1, (0, c_mid_p - c_mid)).reshape(c_mid_p, 1)
    b2_2d = jnp.pad(b2, (0, c_out_p - c_out)).reshape(c_out_p, 1)

    kernel = functools.partial(
        _fused_causal_conv_kernel,
        kernel_size=k, dilation=dilation, pad=pad, h0=h0, h1=h1,
        chunk=chunk, l_tile=l_tile, c_in=c_in, c_out=c_out)

    out = pl.pallas_call(
        kernel,
        out_shape=jax.ShapeDtypeStruct((n, c_out, l_padded), x.dtype),
        grid_spec=pltpu.PrefetchScalarGridSpec(
            num_scalar_prefetch=0,
            grid=(n, n_tiles),
            in_specs=[
                pl.BlockSpec((1, 1, c_in, h0), lambda b, j: (b, j, 0, 0)),
                pl.BlockSpec((1, c_in, l_tile), lambda b, j: (b, 0, j)),
                pl.BlockSpec((c_mid_p, k * c_in_p), lambda b, j: (0, 0)),
                pl.BlockSpec((c_mid_p, 1), lambda b, j: (0, 0)),
                pl.BlockSpec((c_out_p, k * c_mid_p), lambda b, j: (0, 0)),
                pl.BlockSpec((c_out_p, 1), lambda b, j: (0, 0)),
            ],
            out_specs=pl.BlockSpec((1, c_out, l_tile), lambda b, j: (b, 0, j)),
            scratch_shapes=[
                pltpu.VMEM((c_in_p, h0 + l_tile), jnp.float32),   # [halo | tile] input window
                pltpu.VMEM((c_mid_p, h1 + l_tile), jnp.float32),  # layer-1 activations
            ],
        ),
        compiler_params=pltpu.CompilerParams(
            # No cross-iteration state -> both axes parallel (v7x 2-TC split).
            dimension_semantics=("parallel", "parallel"),
            vmem_limit_bytes=16 * 1024 * 1024,
        ),
    )(halo, x_in, w1_flat, b1_2d, w2_flat, b2_2d)

    return out if l_padded == L else out[:, :, :L]


def model_forward(x, params, *, dilation):
    """Model.forward: two stacked causal dilated convs as a single fused kernel."""
    w1, b1, w2, b2 = params
    return fused_causal_conv_stack(x, w1, b1, w2, b2, dilation=dilation)


def _reference_forward(x, params, *, dilation):
    """Pure-JAX reference (lax.conv_general_dilated) for validation."""
    w1, b1, w2, b2 = params

    def conv(x, w, b):
        k = w.shape[-1]
        pad = (k - 1) * dilation
        y = lax.conv_general_dilated(
            x, w,
            window_strides=(1,),
            padding=[(pad, 0)],
            rhs_dilation=(dilation,),
            dimension_numbers=("NCH", "OIH", "NCH"),
            precision=lax.Precision.HIGHEST,
        )
        return y + b.reshape(1, -1, 1)

    return conv(conv(x, w1, b1), w2, b2)


def _make_params(key, c_in, c_mid, c_out, k):
    kw1, kb1, kw2, kb2 = jax.random.split(key, 4)
    w1 = 0.1 * jax.random.normal(kw1, (c_mid, c_in, k), dtype=jnp.float32)
    b1 = 0.1 * jax.random.normal(kb1, (c_mid,), dtype=jnp.float32)
    w2 = 0.1 * jax.random.normal(kw2, (c_out, c_mid, k), dtype=jnp.float32)
    b2 = 0.1 * jax.random.normal(kb2, (c_out,), dtype=jnp.float32)
    return (w1, b1, w2, b2)


if __name__ == "__main__":
    key = jax.random.PRNGKey(0)
    kernel_size, dilation = 3, 2
    fwd = jax.jit(functools.partial(model_forward, dilation=dilation))

    # --- test 1: small shapes consistent with the module (single L tile) ---
    batch, in_channels, out_channels, seq_len = 2, 4, 8, 16
    k1, k2, k3, k4 = jax.random.split(key, 4)

    x = jax.random.normal(k1, (batch, in_channels, seq_len), dtype=jnp.float32)
    params = _make_params(k2, in_channels, out_channels, out_channels, kernel_size)

    out = jax.block_until_ready(fwd(x, params))
    ref = jax.block_until_ready(_reference_forward(x, params, dilation=dilation))
    assert out.shape == (batch, out_channels, seq_len)
    assert jnp.allclose(out, ref, atol=2e-4, rtol=2e-4), "mismatch vs reference (small)"

    # --- test 2: long sequence -> multiple L tiles, overlap-save halo path ---
    batch2, c_in2, c_out2, seq_len2 = 2, 8, 16, 5000
    x2 = jax.random.normal(k3, (batch2, c_in2, seq_len2), dtype=jnp.float32)
    params2 = _make_params(k4, c_in2, c_out2, c_out2, kernel_size)

    out2 = jax.block_until_ready(fwd(x2, params2))
    ref2 = jax.block_until_ready(_reference_forward(x2, params2, dilation=dilation))
    assert out2.shape == (batch2, c_out2, seq_len2)
    assert jnp.allclose(out2, ref2, atol=2e-4, rtol=2e-4), "mismatch vs reference (tiled)"

    print("KERNEL_OK")
</pallas_src>

<mosaic_0001>
module attributes {stable_mosaic.version = 11 : i64} {
  func.func @_fused_causal_conv_kernel(%arg0: i32, %arg1: i32, %arg2: memref<1x1x4x384xf32, #tpu.memory_space<vmem>>, %arg3: memref<1x4x256xf32, #tpu.memory_space<vmem>>, %arg4: memref<8x24xf32, #tpu.memory_space<vmem>>, %arg5: memref<8x1xf32, #tpu.memory_space<vmem>>, %arg6: memref<8x24xf32, #tpu.memory_space<vmem>>, %arg7: memref<8x1xf32, #tpu.memory_space<vmem>>, %arg8: memref<1x8x256xf32, #tpu.memory_space<vmem>>, %arg9: memref<8x640xf32, #tpu.memory_space<vmem>>, %arg10: memref<8x512xf32, #tpu.memory_space<vmem>>) attributes {dimension_semantics = [#tpu.dimension_semantics<parallel>, #tpu.dimension_semantics<parallel>], iteration_bounds = array<i64: 2, 1>, scalar_prefetch = 0 : i64, scratch_operands = 2 : i64, tpu.core_type = #tpu.core_type<tc>, window_params = [{transform_indices = @transform_0, window_bounds = array<i64: 1, 1, 4, 384>}, {transform_indices = @transform_1, window_bounds = array<i64: 1, 4, 256>}, {pipeline_mode = #tpu.pipeline_mode<synchronous>, transform_indices = @transform_2, window_bounds = array<i64: 8, 24>}, {pipeline_mode = #tpu.pipeline_mode<synchronous>, transform_indices = @transform_3, window_bounds = array<i64: 8, 1>}, {pipeline_mode = #tpu.pipeline_mode<synchronous>, transform_indices = @transform_4, window_bounds = array<i64: 8, 24>}, {pipeline_mode = #tpu.pipeline_mode<synchronous>, transform_indices = @transform_5, window_bounds = array<i64: 8, 1>}, {transform_indices = @transform_6, window_bounds = array<i64: 1, 8, 256>}]} {
    %cst = arith.constant 0.000000e+00 : f32
    %0 = vector.broadcast %cst : f32 to vector<4x640xf32>
    %c4 = arith.constant 4 : index
    %c0 = arith.constant 0 : index
    %1 = vector.load %arg9[%c4, %c0] : memref<8x640xf32, #tpu.memory_space<vmem>>, vector<4x640xf32>
    tpu.vector_store %arg9[%c4, %c0], %0 {strides = array<i32>} : memref<8x640xf32, #tpu.memory_space<vmem>>, vector<4x640xf32>,
    %c0_0 = arith.constant 0 : index
    %c0_1 = arith.constant 0 : index
    %c0_2 = arith.constant 0 : index
    %c0_3 = arith.constant 0 : index
    %2 = vector.load %arg2[%c0_0, %c0_1, %c0_2, %c0_3] : memref<1x1x4x384xf32, #tpu.memory_space<vmem>>, vector<1x1x4x384xf32>
    %3 = vector.shape_cast %2 : vector<1x1x4x384xf32> to vector<4x384xf32>
    %c0_4 = arith.constant 0 : index
    %c0_5 = arith.constant 0 : index
    %4 = vector.load %arg9[%c0_4, %c0_5] : memref<8x640xf32, #tpu.memory_space<vmem>>, vector<4x384xf32>
    tpu.vector_store %arg9[%c0_4, %c0_5], %3 {strides = array<i32>} : memref<8x640xf32, #tpu.memory_space<vmem>>, vector<4x384xf32>,
    %c0_6 = arith.constant 0 : index
    %c0_7 = arith.constant 0 : index
    %c0_8 = arith.constant 0 : index
    %5 = vector.load %arg3[%c0_6, %c0_7, %c0_8] : memref<1x4x256xf32, #tpu.memory_space<vmem>>, vector<1x4x256xf32>
    %6 = vector.shape_cast %5 : vector<1x4x256xf32> to vector<4x256xf32>
    %c0_9 = arith.constant 0 : index
    %c384 = arith.constant 384 : index
    %7 = vector.load %arg9[%c0_9, %c384] : memref<8x640xf32, #tpu.memory_space<vmem>>, vector<4x256xf32>
    tpu.vector_store %arg9[%c0_9, %c384], %6 {strides = array<i32>} : memref<8x640xf32, #tpu.memory_space<vmem>>, vector<4x256xf32>,
    %c0_10 = arith.constant 0 : index
    %c0_11 = arith.constant 0 : index
    %8 = vector.load %arg4[%c0_10, %c0_11] : memref<8x24xf32, #tpu.memory_space<vmem>>, vector<8x24xf32>
    %c0_12 = arith.constant 0 : index
    %c0_13 = arith.constant 0 : index
    %9 = vector.load %arg5[%c0_12, %c0_13] : memref<8x1xf32, #tpu.memory_space<vmem>>, vector<8x1xf32>
    %c0_14 = arith.constant 0 : index
    %c0_15 = arith.constant 0 : index
    %10 = vector.load %arg6[%c0_14, %c0_15] : memref<8x24xf32, #tpu.memory_space<vmem>>, vector<8x24xf32>
    %c0_16 = arith.constant 0 : index
    %c0_17 = arith.constant 0 : index
    %11 = vector.load %arg7[%c0_16, %c0_17] : memref<8x1xf32, #tpu.memory_space<vmem>>, vector<8x1xf32>
    %c0_18 = arith.constant 0 : index
    %c124 = arith.constant 124 : index
    %12 = vector.load %arg9[%c0_18, %c124] : memref<8x640xf32, #tpu.memory_space<vmem>>, vector<8x256xf32>
    %c0_19 = arith.constant 0 : index
    %c126 = arith.constant 126 : index
    %13 = vector.load %arg9[%c0_19, %c126] : memref<8x640xf32, #tpu.memory_space<vmem>>, vector<8x256xf32>
    %c0_20 = arith.constant 0 : index
    %c128 = arith.constant 128 : index
    %14 = vector.load %arg9[%c0_20, %c128] : memref<8x640xf32, #tpu.memory_space<vmem>>, vector<8x256xf32>
    %15 = tpu.concatenate %12, %13, %14 in 0 : vector<8x256xf32>, vector<8x256xf32>, vector<8x256xf32> -> vector<24x256xf32>
    %cst_21 = arith.constant dense<0.000000e+00> : vector<8x256xf32>
    %16 = tpu.matmul %8, %15, %cst_21 {dimension_numbers = #tpu.dot_dimension_numbers<[1], [0], [0], [1], [0, 0, 1, 1], [], []>} : vector<8x24xf32>, vector<24x256xf32>, vector<8x256xf32> -> vector<8x256xf32>
    %17 = vector.broadcast %9 : vector<8x1xf32> to vector<8x256xf32>
    %18 = arith.addf %16, %17 : vector<8x256xf32>
    %c0_22 = arith.constant 0 : index
    %c0_23 = arith.constant 0 : index
    %19 = vector.load %arg10[%c0_22, %c0_23] : memref<8x512xf32, #tpu.memory_space<vmem>>, vector<8x256xf32>
    tpu.vector_store %arg10[%c0_22, %c0_23], %18 {strides = array<i32>} : memref<8x512xf32, #tpu.memory_space<vmem>>, vector<8x256xf32>,
    %c0_24 = arith.constant 0 : index
    %c380 = arith.constant 380 : index
    %20 = vector.load %arg9[%c0_24, %c380] : memref<8x640xf32, #tpu.memory_space<vmem>>, vector<8x256xf32>
    %c0_25 = arith.constant 0 : index
    %c382 = arith.constant 382 : index
    %21 = vector.load %arg9[%c0_25, %c382] : memref<8x640xf32, #tpu.memory_space<vmem>>, vector<8x256xf32>
    %c0_26 = arith.constant 0 : index
    %c384_27 = arith.constant 384 : index
    %22 = vector.load %arg9[%c0_26, %c384_27] : memref<8x640xf32, #tpu.memory_space<vmem>>, vector<8x256xf32>
    %23 = tpu.concatenate %20, %21, %22 in 0 : vector<8x256xf32>, vector<8x256xf32>, vector<8x256xf32> -> vector<24x256xf32>
    %cst_28 = arith.constant dense<0.000000e+00> : vector<8x256xf32>
    %24 = tpu.matmul %8, %23, %cst_28 {dimension_numbers = #tpu.dot_dimension_numbers<[1], [0], [0], [1], [0, 0, 1, 1], [], []>} : vector<8x24xf32>, vector<24x256xf32>, vector<8x256xf32> -> vector<8x256xf32>
    %25 = vector.broadcast %9 : vector<8x1xf32> to vector<8x256xf32>
    %26 = arith.addf %24, %25 : vector<8x256xf32>
    %c0_29 = arith.constant 0 : index
    %c256 = arith.constant 256 : index
    %27 = vector.load %arg10[%c0_29, %c256] : memref<8x512xf32, #tpu.memory_space<vmem>>, vector<8x256xf32>
    tpu.vector_store %arg10[%c0_29, %c256], %26 {strides = array<i32>} : memref<8x512xf32, #tpu.memory_space<vmem>>, vector<8x256xf32>,
    %c0_i32 = arith.constant 0 : i32
    %28 = arith.cmpi eq, %arg1, %c0_i32 : i32
    %29 = arith.extui %28 : i1 to i32
    %c0_i32_30 = arith.constant 0 : i32
    %30 = arith.cmpi ne, %29, %c0_i32_30 : i32
    scf.if %30 {
      %cst_39 = arith.constant 0.000000e+00 : f32
      %41 = vector.broadcast %cst_39 : f32 to vector<8x256xf32>
      %c0_40 = arith.constant 0 : index
      %c0_41 = arith.constant 0 : index
      %42 = vector.load %arg10[%c0_40, %c0_41] : memref<8x512xf32, #tpu.memory_space<vmem>>, vector<8x256xf32>
      tpu.vector_store %arg10[%c0_40, %c0_41], %41 {strides = array<i32>} : memref<8x512xf32, #tpu.memory_space<vmem>>, vector<8x256xf32>,
    } else {
    }
    %c0_31 = arith.constant 0 : index
    %c252 = arith.constant 252 : index
    %31 = vector.load %arg10[%c0_31, %c252] : memref<8x512xf32, #tpu.memory_space<vmem>>, vector<8x256xf32>
    %c0_32 = arith.constant 0 : index
    %c254 = arith.constant 254 : index
    %32 = vector.load %arg10[%c0_32, %c254] : memref<8x512xf32, #tpu.memory_space<vmem>>, vector<8x256xf32>
    %c0_33 = arith.constant 0 : index
    %c256_34 = arith.constant 256 : index
    %33 = vector.load %arg10[%c0_33, %c256_34] : memref<8x512xf32, #tpu.memory_space<vmem>>, vector<8x256xf32>
    %34 = tpu.concatenate %31, %32, %33 in 0 : vector<8x256xf32>, vector<8x256xf32>, vector<8x256xf32> -> vector<24x256xf32>
    %cst_35 = arith.constant dense<0.000000e+00> : vector<8x256xf32>
    %35 = tpu.matmul %10, %34, %cst_35 {dimension_numbers = #tpu.dot_dimension_numbers<[1], [0], [0], [1], [0, 0, 1, 1], [], []>} : vector<8x24xf32>, vector<24x256xf32>, vector<8x256xf32> -> vector<8x256xf32>
    %36 = vector.broadcast %11 : vector<8x1xf32> to vector<8x256xf32>
    %37 = arith.addf %35, %36 : vector<8x256xf32>
    %c0_36 = arith.constant 0 : index
    %c0_37 = arith.constant 0 : index
    %c0_38 = arith.constant 0 : index
    %38 = vector.load %arg8[%c0_36, %c0_37, %c0_38] : memref<1x8x256xf32, #tpu.memory_space<vmem>>, vector<1x8x256xf32>
    %39 = vector.shape_cast %38 : vector<1x8x256xf32> to vector<8x256xf32>
    %40 = vector.shape_cast %37 : vector<8x256xf32> to vector<1x8x256xf32>
    tpu.vector_store %arg8[%c0_36, %c0_37, %c0_38], %40 {strides = array<i32>} : memref<1x8x256xf32, #tpu.memory_space<vmem>>, vector<1x8x256xf32>,
    return
  }
  func.func @transform_0(%arg0: i32, %arg1: i32) -> (i32, i32, i32, i32) {
    %c0_i32 = arith.constant 0 : i32
    %c0_i32_0 = arith.constant 0 : i32
    %c0_i32_1 = arith.constant 0 : i32
    return %arg0, %arg1, %c0_i32, %c0_i32_0 : i32, i32, i32, i32
  }
  func.func @transform_1(%arg0: i32, %arg1: i32) -> (i32, i32, i32) {
    %c0_i32 = arith.constant 0 : i32
    %c0_i32_0 = arith.constant 0 : i32
    return %arg0, %c0_i32, %arg1 : i32, i32, i32
  }
  func.func @transform_2(%arg0: i32, %arg1: i32) -> (i32, i32) {
    %c0_i32 = arith.constant 0 : i32
    %c0_i32_0 = arith.constant 0 : i32
    %c0_i32_1 = arith.constant 0 : i32
    return %c0_i32, %c0_i32_0 : i32, i32
  }
  func.func @transform_3(%arg0: i32, %arg1: i32) -> (i32, i32) {
    %c0_i32 = arith.constant 0 : i32
    %c0_i32_0 = arith.constant 0 : i32
    %c0_i32_1 = arith.constant 0 : i32
    return %c0_i32, %c0_i32_0 : i32, i32
  }
  func.func @transform_4(%arg0: i32, %arg1: i32) -> (i32, i32) {
    %c0_i32 = arith.constant 0 : i32
    %c0_i32_0 = arith.constant 0 : i32
    %c0_i32_1 = arith.constant 0 : i32
    return %c0_i32, %c0_i32_0 : i32, i32
  }
  func.func @transform_5(%arg0: i32, %arg1: i32) -> (i32, i32) {
    %c0_i32 = arith.constant 0 : i32
    %c0_i32_0 = arith.constant 0 : i32
    %c0_i32_1 = arith.constant 0 : i32
    return %c0_i32, %c0_i32_0 : i32, i32
  }
  func.func @transform_6(%arg0: i32, %arg1: i32) -> (i32, i32, i32) {
    %c0_i32 = arith.constant 0 : i32
    %c0_i32_0 = arith.constant 0 : i32
    return %arg0, %c0_i32, %arg1 : i32, i32, i32
  }
}

</mosaic_0001>

<llo_original>
// kernel: model_forward.1
$region0: #{model_forward.1}
  #allocation0 [shape = 'u32[]', space=smem, size = 0x4, offset = 0x4, fixed_abs, tag = 'smem constant byte address 0x4 - core index']
  #allocation1 [shape = 'u32[144,128]{1,0:T(1,128)}', space=vmem, size = 0x12000, scoped, tag = 'internal scratch']
  #allocation2 [shape = 'f32[8,640]{1,0:T(8,128)}', space=vmem, size = 0x5000, scoped, tag = 'scratch operand']
  #allocation3 [shape = 'f32[8,512]{1,0:T(8,128)}', space=vmem, size = 0x4000, scoped, tag = 'scratch operand']
  %s0 = inlined_call_operand.vmem [shape: f32[2,1,4,384], index: 0, kind: input, shape index: {}]
  %s1 = inlined_call_operand.vmem [shape: f32[2,4,256], index: 1, kind: input, shape index: {}]
  %s2 = inlined_call_operand.vmem [shape: f32[8,24], index: 2, kind: input, shape index: {}]
  %s3 = inlined_call_operand.vmem [shape: f32[8,1], index: 3, kind: input, shape index: {}]
  %s4 = inlined_call_operand.vmem [shape: f32[8,24], index: 4, kind: input, shape index: {}]
  %s5 = inlined_call_operand.vmem [shape: f32[8,1], index: 5, kind: input, shape index: {}]
  %s6 = inlined_call_operand.vmem [shape: f32[2,8,256], index: 6, kind: output, shape index: {}]
  %s7 = sld [smem:[#allocation0]]
  $region61: #{model_forward.1} parent=0
    _
  %s9 = ssub.s32 1, %s7
  %s10 = scalar_select 0, %s9, %s7
  loop: start=0, step=1, limit=4
  $region2: #{model_forward.1} parent=0 // loop_pre_header
    _
  $region3: #{model_forward.1} parent=0 // loop_header
    %s12 = sphi 0, %s16
    %p13 = scmp.ge.s32.totalorder %s12, 4
    %s19 = sphi 0, %s31
    %s20 = sphi 0, %s27
    %s21 = sphi 0, %s19
    %s22 = sphi 0, %s20
    %s23 = sphi 0, %s21
    %s24 = sphi 0, %s22
    %s36 = sphi 0, %s38
    %s39 = sphi 0, %s36
    %s40 = sphi 0, %s39
    %s56 = sphi 0, %s40
    %s64 = sphi 0, %s66
    %s67 = sphi 0, %s64
    %s68 = sphi 0, %s67
    %s84 = sphi 0, %s68
    %s88 = sphi 0, %s88
    %s90 = sphi 0, %s88
    %s91 = sphi 0, %s90
    %s105 = sphi 0, %s91
    %s109 = sphi 0, %s109
    %s111 = sphi 0, %s109
    %s112 = sphi 0, %s111
    %s126 = sphi 0, %s112
    %s130 = sphi 0, %s130
    %s132 = sphi 0, %s130
    %s133 = sphi 0, %s132
    %s147 = sphi 0, %s133
    %s151 = sphi 0, %s151
    %s153 = sphi 0, %s151
    %s154 = sphi 0, %s153
    %s168 = sphi 0, %s154
    %s176 = sphi 0, %s178
    %s179 = sphi 0, %s176
    %s180 = sphi 0, %s179
    %s196 = sphi 0, %s180
  $region4: #{model_forward.1} parent=0 // loop_header_branch
    %15 = sbr.rel (%p13) target = $region8
  $region5: #{model_forward.1} parent=0 // loop_body
    %s17 = ssub.s32 %s12, 1
    %s18 = ssub.s32 %s12, 2
    %s25 = sadd.s32 1, %s20
    %p26 = scmp.ge.s32.totalorder %s25, 1
    %s27 = scalar_select %p26, 0, %s25
    %s28 = sadd.s32 1, %s19
    %s29 = scalar_select %p26, %s28, %s19
    %p30 = scmp.ge.s32.totalorder %s29, 2
    %s31 = scalar_select %p30, 0, %s29
    %s32 = ssub.s32 %s19, %s31
    %s33 = ssub.s32 %s20, %s27
    %s34 = sor.u32 %s32, %s33
    %p35 = scmp.eq.s32.totalorder %s34, 0
    %s37 = sadd.s32 %s36, 1
    %s38 = scalar_select %p35, %s36, %s37
    %p41 = pneg %p35
    %p42 = scmp.eq.s32.totalorder %s12, 1
    %p43 = por %p41, %p42
    %p44 = scmp.ne.s32.totalorder %s36, %s39
    %p45 = scmp.eq.s32.totalorder %s12, 0
    %p46 = por %p44, %p45
    %p47 = scmp.ne.s32.totalorder %s36, %s39
    %p48 = scmp.eq.s32.totalorder %s17, 1
    %p49 = por %p47, %p48
    %p50 = scmp.ne.s32.totalorder %s39, %s40
    %p51 = scmp.eq.s32.totalorder %s17, 0
    %p52 = por %p50, %p51
    %p53 = scmp.ne.s32.totalorder %s39, %s40
    %p54 = scmp.eq.s32.totalorder %s18, 1
    %p55 = por %p53, %p54
    %p57 = scmp.ne.s32.totalorder %s40, %s56
    %p58 = scmp.eq.s32.totalorder %s18, 0
    %p59 = por %p57, %p58
    %s60 = ssub.s32 %s19, %s31
    %s61 = ssub.s32 %s20, %s27
    %s62 = sor.u32 %s60, %s61
    %p63 = scmp.eq.s32.totalorder %s62, 0
    %s65 = sadd.s32 %s64, 1
    %s66 = scalar_select %p63, %s64, %s65
    %p69 = pneg %p63
    %p70 = scmp.eq.s32.totalorder %s12, 1
    %p71 = por %p69, %p70
    %p72 = scmp.ne.s32.totalorder %s64, %s67
    %p73 = scmp.eq.s32.totalorder %s12, 0
    %p74 = por %p72, %p73
    %p75 = scmp.ne.s32.totalorder %s64, %s67
    %p76 = scmp.eq.s32.totalorder %s17, 1
    %p77 = por %p75, %p76
    %p78 = scmp.ne.s32.totalorder %s67, %s68
    %p79 = scmp.eq.s32.totalorder %s17, 0
    %p80 = por %p78, %p79
    %p81 = scmp.ne.s32.totalorder %s67, %s68
    %p82 = scmp.eq.s32.totalorder %s18, 1
    %p83 = por %p81, %p82
    %p85 = scmp.ne.s32.totalorder %s68, %s84
    %p86 = scmp.eq.s32.totalorder %s18, 0
    %p87 = por %p85, %p86
    %s89 = sadd.s32 %s88, 1
    %p92 = scmp.eq.s32.totalorder %s12, 1
    %p93 = scmp.ne.s32.totalorder %s88, %s90
    %p94 = scmp.eq.s32.totalorder %s12, 0
    %p95 = por %p93, %p94
    %p96 = scmp.ne.s32.totalorder %s88, %s90
    %p97 = scmp.eq.s32.totalorder %s17, 1
    %p98 = por %p96, %p97
    %p99 = scmp.ne.s32.totalorder %s90, %s91
    %p100 = scmp.eq.s32.totalorder %s17, 0
    %p101 = por %p99, %p100
    %p102 = scmp.ne.s32.totalorder %s90, %s91
    %p103 = scmp.eq.s32.totalorder %s18, 1
    %p104 = por %p102, %p103
    %p106 = scmp.ne.s32.totalorder %s91, %s105
    %p107 = scmp.eq.s32.totalorder %s18, 0
    %p108 = por %p106, %p107
    %s110 = sadd.s32 %s109, 1
    %p113 = scmp.eq.s32.totalorder %s12, 1
    %p114 = scmp.ne.s32.totalorder %s109, %s111
    %p115 = scmp.eq.s32.totalorder %s12, 0
    %p116 = por %p114, %p115
    %p117 = scmp.ne.s32.totalorder %s109, %s111
    %p118 = scmp.eq.s32.totalorder %s17, 1
    %p119 = por %p117, %p118
    %p120 = scmp.ne.s32.totalorder %s111, %s112
    %p121 = scmp.eq.s32.totalorder %s17, 0
    %p122 = por %p120, %p121
    %p123 = scmp.ne.s32.totalorder %s111, %s112
    %p124 = scmp.eq.s32.totalorder %s18, 1
    %p125 = por %p123, %p124
    %p127 = scmp.ne.s32.totalorder %s112, %s126
    %p128 = scmp.eq.s32.totalorder %s18, 0
    %p129 = por %p127, %p128
    %s131 = sadd.s32 %s130, 1
    %p134 = scmp.eq.s32.totalorder %s12, 1
    %p135 = scmp.ne.s32.totalorder %s130, %s132
    %p136 = scmp.eq.s32.totalorder %s12, 0
    %p137 = por %p135, %p136
    %p138 = scmp.ne.s32.totalorder %s130, %s132
    %p139 = scmp.eq.s32.totalorder %s17, 1
    %p140 = por %p138, %p139
    %p141 = scmp.ne.s32.totalorder %s132, %s133
    %p142 = scmp.eq.s32.totalorder %s17, 0
    %p143 = por %p141, %p142
    %p144 = scmp.ne.s32.totalorder %s132, %s133
    %p145 = scmp.eq.s32.totalorder %s18, 1
    %p146 = por %p144, %p145
    %p148 = scmp.ne.s32.totalorder %s133, %s147
    %p149 = scmp.eq.s32.totalorder %s18, 0
    %p150 = por %p148, %p149
    %s152 = sadd.s32 %s151, 1
    %p155 = scmp.eq.s32.totalorder %s12, 1
    %p156 = scmp.ne.s32.totalorder %s151, %s153
    %p157 = scmp.eq.s32.totalorder %s12, 0
    %p158 = por %p156, %p157
    %p159 = scmp.ne.s32.totalorder %s151, %s153
    %p160 = scmp.eq.s32.totalorder %s17, 1
    %p161 = por %p159, %p160
    %p162 = scmp.ne.s32.totalorder %s153, %s154
    %p163 = scmp.eq.s32.totalorder %s17, 0
    %p164 = por %p162, %p163
    %p165 = scmp.ne.s32.totalorder %s153, %s154
    %p166 = scmp.eq.s32.totalorder %s18, 1
    %p167 = por %p165, %p166
    %p169 = scmp.ne.s32.totalorder %s154, %s168
    %p170 = scmp.eq.s32.totalorder %s18, 0
    %p171 = por %p169, %p170
    %s172 = ssub.s32 %s19, %s31
    %s173 = ssub.s32 %s20, %s27
    %s174 = sor.u32 %s172, %s173
    %p175 = scmp.eq.s32.totalorder %s174, 0
    %s177 = sadd.s32 %s176, 1
    %s178 = scalar_select %p175, %s176, %s177
    %p181 = pneg %p175
    %p182 = scmp.eq.s32.totalorder %s12, 1
    %p183 = por %p181, %p182
    %p184 = scmp.ne.s32.totalorder %s176, %s179
    %p185 = scmp.eq.s32.totalorder %s12, 0
    %p186 = por %p184, %p185
    %p187 = scmp.ne.s32.totalorder %s176, %s179
    %p188 = scmp.eq.s32.totalorder %s17, 1
    %p189 = por %p187, %p188
    %p190 = scmp.ne.s32.totalorder %s179, %s180
    %p191 = scmp.eq.s32.totalorder %s17, 0
    %p192 = por %p190, %p191
    %p193 = scmp.ne.s32.totalorder %s179, %s180
    %p194 = scmp.eq.s32.totalorder %s18, 1
    %p195 = por %p193, %p194
    %p197 = scmp.ne.s32.totalorder %s180, %s196
    %p198 = scmp.eq.s32.totalorder %s18, 0
    %p199 = por %p197, %p198
    %p200 = scmp.le.s32.totalorder 1, %s12
    %p201 = scmp.lt.s32.totalorder %s12, 3
    %p202 = pnand %p200, %p201
    %p203 = pneg %p202
    // Predicated region
    $region9: #{model_forward.1} parent=5 // pred_check
      _
    $region10: #{model_forward.1} parent=5 // pred_check_branch
      %205 = sbr.rel (%p202) target = $region12
    $region11: #{model_forward.1} parent=5 // pred_region
      %s206 = ssub.s32 %s12, 1
      // Predicated region
      $region13: #{model_forward.1} parent=11 // pred_check
        %p207 = pneg %p101
      $region14: #{model_forward.1} parent=11 // pred_check_branch
        %209 = sbr.rel (%p207) target = $region16
      $region15: #{model_forward.1} parent=11 // pred_region
        _
      $region16: #{model_forward.1} parent=11 // pred_fallthru
        _
      // Predicated region
      $region17: #{model_forward.1} parent=11 // pred_check
        %p210 = pneg %p122
      $region18: #{model_forward.1} parent=11 // pred_check_branch
        %212 = sbr.rel (%p210) target = $region20
      $region19: #{model_forward.1} parent=11 // pred_region
        _
      $region20: #{model_forward.1} parent=11 // pred_fallthru
        _
      // Predicated region
      $region21: #{model_forward.1} parent=11 // pred_check
        %p213 = pneg %p143
      $region22: #{model_forward.1} parent=11 // pred_check_branch
        %215 = sbr.rel (%p213) target = $region24
      $region23: #{model_forward.1} parent=11 // pred_region
        _
      $region24: #{model_forward.1} parent=11 // pred_fallthru
        _
      // Predicated region
      $region25: #{model_forward.1} parent=11 // pred_check
        %p216 = pneg %p164
      $region26: #{model_forward.1} parent=11 // pred_check_branch
        %218 = sbr.rel (%p216) target = $region28
      $region27: #{model_forward.1} parent=11 // pred_region
        _
      $region28: #{model_forward.1} parent=11 // pred_fallthru
        _
    $region12: #{model_forward.1} parent=5 // pred_fallthru
      _
    %p219 = scmp.lt.s32.totalorder %s12, 2
    // Predicated region
    $region29: #{model_forward.1} parent=5 // pred_check
      %p220 = pneg %p219
    $region30: #{model_forward.1} parent=5 // pred_check_branch
      %222 = sbr.rel (%p220) target = $region32
    $region31: #{model_forward.1} parent=5 // pred_region
      // Predicated region
      $region33: #{model_forward.1} parent=31 // pred_check
        %p223 = pneg %p46
      $region34: #{model_forward.1} parent=31 // pred_check_branch
        %225 = sbr.rel (%p223) target = $region36
      $region35: #{model_forward.1} parent=31 // pred_region
        %p226 = scmp.lt.s32.totalorder %s19, 1
        %s227 = scalar_select %p226, %s19, 1
        %p228 = scmp.lt.s32.totalorder %s20, 0
        %s229 = scalar_select %p228, %s20, 0
        %s230 = smul.addr %s229, 3
        %s231 = smul.addr %s227, 3
        %s232 = sadd.s32 %s230, %s231
        %s233 = smul.addr %s232, 4
        %s234 = scalar_lea.vmem %s0, %s233
      $region36: #{model_forward.1} parent=31 // pred_fallthru
        _
      // Predicated region
      $region37: #{model_forward.1} parent=31 // pred_check
        %p235 = pneg %p74
      $region38: #{model_forward.1} parent=31 // pred_check_branch
        %237 = sbr.rel (%p235) target = $region40
      $region39: #{model_forward.1} parent=31 // pred_region
        %s238 = smul.u32 2, %s20
        %p239 = scmp.lt.s32.totalorder %s19, 1
        %s240 = scalar_select %p239, %s19, 1
        %p241 = scmp.lt.s32.totalorder %s238, 1
        %s242 = scalar_select %p241, %s238, 1
        %s243 = smul.addr %s240, 2
        %s244 = sadd.s32 %s242, %s243
        %s245 = smul.addr %s244, 4
        %s246 = scalar_lea.vmem %s1, %s245
        %s247 = smul.u32 2, %s20
      $region40: #{model_forward.1} parent=31 // pred_fallthru
        _
    $region32: #{model_forward.1} parent=5 // pred_fallthru
      _
    %p248 = scmp.le.s32.totalorder 1, %s12
    %p249 = scmp.lt.s32.totalorder %s12, 3
    %p250 = pnand %p248, %p249
    %p251 = pneg %p250
    // Predicated region
    $region41: #{model_forward.1} parent=5 // pred_check
      _
    $region42: #{model_forward.1} parent=5 // pred_check_branch
      %253 = sbr.rel (%p250) target = $region44
    $region43: #{model_forward.1} parent=5 // pred_region
      %s254 = ssub.s32 %s12, 1
      %p255 = scmp.lt.s32.totalorder %s21, 1
      %s256 = scalar_select %p255, %s21, 1
      %p257 = scmp.lt.s32.totalorder %s22, 0
      %s258 = scalar_select %p257, %s22, 0
      %s259 = smul.addr %s258, 3
      %s260 = smul.addr %s256, 3
      %s261 = sadd.s32 %s259, %s260
      %s262 = smul.addr %s261, 4
      %s263 = scalar_lea.vmem %s0, %s262
      %p264 = pneg %p52
      %p265 = pneg %p49
      %s266 = smul.u32 2, %s22
      %p267 = scmp.lt.s32.totalorder %s21, 1
      %s268 = scalar_select %p267, %s21, 1
      %p269 = scmp.lt.s32.totalorder %s266, 1
      %s270 = scalar_select %p269, %s266, 1
      %s271 = smul.addr %s268, 2
      %s272 = sadd.s32 %s270, %s271
      %s273 = smul.addr %s272, 4
      %s274 = scalar_lea.vmem %s1, %s273
      %p275 = pneg %p80
      %p276 = pneg %p77
      %p277 = pneg %p101
      %p278 = pneg %p98
      %p279 = pneg %p122
      %p280 = pneg %p119
      %p281 = pneg %p143
      %p282 = pneg %p140
      %p283 = pneg %p164
      %p284 = pneg %p161
      %p285 = pneg %p192
      %p286 = pneg %p189
      %s287 = smul.u32 2, %s22
      %p288 = scmp.lt.s32.totalorder %s21, 1
      %s289 = scalar_select %p288, %s21, 1
      %p290 = scmp.lt.s32.totalorder %s287, 1
      %s291 = scalar_select %p290, %s287, 1
      %s292 = smul.addr %s289, 2
      %s293 = sadd.s32 %s291, %s292
      %s294 = smul.addr %s293, 8
      %s295 = scalar_lea.vmem %s6, %s294
      %p296 = scmp.lt.s32.totalorder %s21, 1
      %s297 = scalar_select %p296, %s21, 1
      %p298 = scmp.lt.s32.totalorder %s22, 0
      %s299 = scalar_select %p298, %s22, 0
      %s300 = smul.addr %s299, 3
      %s301 = smul.addr %s297, 3
      %s302 = sadd.s32 %s300, %s301
      %s303 = smul.addr %s302, 4
      %s304 = scalar_lea.vmem %s0, %s303
      %s305 = smul.u32 2, %s22
      %p306 = scmp.lt.s32.totalorder %s21, 1
      %s307 = scalar_select %p306, %s21, 1
      %p308 = scmp.lt.s32.totalorder %s305, 1
      %s309 = scalar_select %p308, %s305, 1
      %s310 = smul.addr %s307, 2
      %s311 = sadd.s32 %s309, %s310
      %s312 = smul.addr %s311, 4
      %s313 = scalar_lea.vmem %s1, %s312
      %s314 = smul.u32 2, %s22
      %s315 = smul.u32 2, %s22
      %p316 = scmp.lt.s32.totalorder %s21, 1
      %s317 = scalar_select %p316, %s21, 1
      %p318 = scmp.lt.s32.totalorder %s315, 1
      %s319 = scalar_select %p318, %s315, 1
      %s320 = smul.addr %s317, 2
      %s321 = sadd.s32 %s319, %s320
      %s322 = smul.addr %s321, 8
      %s323 = scalar_lea.vmem %s6, %s322
      %s324 = smul.u32 2, %s22
      %325 = vst [vmem:[#allocation2] sm:$0xf0] 0.0
      %326 = vst [vmem:[#allocation2 + $0x8] sm:$0xf0] 0.0
      %327 = vst [vmem:[#allocation2 + $0x10] sm:$0xf0] 0.0
      %328 = vst [vmem:[#allocation2 + $0x18] sm:$0xf0] 0.0
      %329 = vst [vmem:[#allocation2 + $0x20] sm:$0xf0] 0.0
      %v330 = vld [vmem:[%s304] sm:$0xff]
      %v331 = vld [vmem:[%s304 + $0x8] sm:$0xf]
      %v333 = vcombine.high %v330, %v330
      %335 = vst [vmem:[#allocation2] sm:$0xf] %v330
      %336 = vst [vmem:[#allocation2 + $0x8] sm:$0xf] %v333
      %337 = vst [vmem:[#allocation2 + $0x10] sm:$0xf] %v331
      %v338 = vld [vmem:[%s313] sm:$0xff]
      %v340 = vcombine.high %v338, %v338
      %342 = vst [vmem:[#allocation2 + $0x18] sm:$0xf] %v338
      %343 = vst [vmem:[#allocation2 + $0x20] sm:$0xf] %v340
      %v344 = vld [vmem:[%s2] sm:$0xff]
      %v345 = vld [vmem:[%s3] sm:$0xff]
      %v346 = vld [vmem:[%s4] sm:$0xff]
      %v347 = vld [vmem:[%s5] sm:$0xff]
      %v348 = vld [vmem:[#allocation2] sm:$0xff]
      %v349 = vld [vmem:[#allocation2 + $0x8] sm:$0xff]
      %v350 = vld [vmem:[#allocation2 + $0x10] sm:$0xff]
      %354 = vrot.lane.b32.xlu0 %v348, 126
      %v355 = vpop.permute.xlu0 %354
      %356 = vrot.lane.b32.xlu0 %v349, 126
      %v357 = vpop.permute.xlu0 %356
      %358 = vrot.lane.b32.xlu0 %v350, 126
      %v359 = vpop.permute.xlu0 %358
      %vm360 = vcmask 1031168
      %v361 = vsel %vm360, %v355, %v357
      %v362 = vsel %vm360, %v357, %v359
      %363 = vrot.lane.b32.xlu0 %v349, 124
      %v364 = vpop.permute.xlu0 %363
      %365 = vrot.lane.b32.xlu0 %v350, 124
      %v366 = vpop.permute.xlu0 %365
      %vm367 = vcmask 1014784
      %v368 = vsel %vm367, %v364, %v366
      %370 = vset.pattern.permute.xlu0 0
      %371 = vperm.xlu0 %370, %v345
      %v372 = vpop.permute.xlu0 %371
      %374 = vrot.lane.b32.xlu0 %v348, 4
      %v375 = vpop.permute.xlu0 %374
      %376 = vrot.lane.b32.xlu0 %v349, 4
      %v377 = vpop.permute.xlu0 %376
      %378 = vrot.lane.b32.xlu0 %v350, 4
      %v379 = vpop.permute.xlu0 %378
      %380 = vrot.lane.b32.xlu0 %v361, 4
      %v381 = vpop.permute.xlu0 %380
      %382 = vrot.lane.b32.xlu0 %v362, 4
      %v383 = vpop.permute.xlu0 %382
      %384 = vrot.lane.b32.xlu0 %v359, 4
      %v385 = vpop.permute.xlu0 %384
      %386 = vrot.lane.b32.xlu0 %v364, 4
      %v387 = vpop.permute.xlu0 %386
      %388 = vrot.lane.b32.xlu0 %v368, 4
      %v389 = vpop.permute.xlu0 %388
      %390 = vrot.lane.b32.xlu0 %v366, 4
      %v391 = vpop.permute.xlu0 %390
      %vm392 = vcmask 31744
      %v393 = vsel %vm392, %v375, %v377
      %v394 = vsel %vm392, %v377, %v379
      %v395 = vsel %vm392, %v381, %v383
      %v396 = vsel %vm392, %v383, %v385
      %v397 = vsel %vm392, %v387, %v389
      %v398 = vsel %vm392, %v389, %v391
      %vm405 = vcmask 195584
      %v407 = vsel %vm405, %v344, 0
      %409 = vmatprep.subr.mxu0 0.0
      %410 = vmatpush1.msra.mxu0 0.0
      %411 = vmatprep.subr.mxu0 0.0
      %412 = vmatpush1.msra.mxu0 0.0
      %413 = vmatprep.subr.mxu0 0.0
      %414 = vmatpush1.msra.mxu0 0.0
      %415 = vmatprep.subr.mxu0 0.0
      %416 = vmatpush1.msra.mxu0 0.0
      %417 = vmatprep.subr.mxu0 0.0
      %418 = vmatpush1.msra.mxu0 0.0
      %419 = vmatprep.subr.mxu0 0.0
      %420 = vmatpush1.msra.mxu0 0.0
      %421 = vmatprep.subr.mxu0 0.0
      %422 = vmatpush1.msra.mxu0 0.0
      %423 = vmatprep.subr.mxu0 0.0
      %424 = vmatpush1.msra.mxu0 0.0
      %425 = vmatprep.subr.mxu0 0.0
      %426 = vmatpush1.msra.mxu0 0.0
      %427 = vmatprep.subr.mxu0 0.0
      %428 = vmatpush1.msra.mxu0 0.0
      %429 = vmatprep.subr.mxu0 0.0
      %430 = vmatpush1.msra.mxu0 0.0
      %431 = vmatprep.subr.mxu0 0.0
      %432 = vmatpush1.msra.mxu0 0.0
      %433 = vmatprep.subr.mxu0 0.0
      %434 = vmatpush1.msra.mxu0 0.0
      %435 = vmatprep.subr.mxu0 %v398
      %436 = vmatpush1.msra.mxu0 %v397
      %437 = vmatprep.subr.mxu0 %v396
      %438 = vmatpush1.msra.mxu0 %v395
      %439 = vmatprep.subr.mxu0 %v394
      %440 = vmatpush1.msra.mxu0 %v393
      %441 = vmatprep.subr.mxu0 0.0
      %442 = vmatpush2.msra.mxu0 0.0
      %443 = vmatprep.subr.mxu0 0.0
      %444 = vmatpush2.msra.mxu0 0.0
      %445 = vmatprep.subr.mxu0 0.0
      %446 = vmatpush2.msra.mxu0 0.0
      %447 = vmatprep.subr.mxu0 0.0
      %448 = vmatpush2.msra.mxu0 0.0
      %449 = vmatprep.subr.mxu0 0.0
      %450 = vmatpush2.msra.mxu0 0.0
      %451 = vmatprep.subr.mxu0 0.0
      %452 = vmatpush2.msra.mxu0 0.0
      %453 = vmatprep.subr.mxu0 0.0
      %454 = vmatpush2.msra.mxu0 0.0
      %455 = vmatprep.subr.mxu0 0.0
      %456 = vmatpush2.msra.mxu0 0.0
      %457 = vmatprep.subr.mxu0 0.0
      %458 = vmatpush2.msra.mxu0 0.0
      %459 = vmatprep.subr.mxu0 0.0
      %460 = vmatpush2.msra.mxu0 0.0
      %461 = vmatprep.subr.mxu0 0.0
      %462 = vmatpush2.msra.mxu0 0.0
      %463 = vmatprep.subr.mxu0 0.0
      %464 = vmatpush2.msra.mxu0 0.0
      %465 = vmatprep.subr.mxu0 0.0
      %466 = vmatpush2.msra.mxu0 0.0
      %467 = vmatprep.subr.mxu0 0.0
      %468 = vmatpush2.msra.mxu0 0.0
      %469 = vmatprep.subr.mxu0 0.0
      %470 = vmatpush2.msra.mxu0 0.0
      %471 = vmatprep.subr.mxu0 0.0
      %472 = vmatpush2.msra.mxu0 0.0
      %473 = vmatprep.mubr.f32.mxu0 0.0
      %474 = vmatmul.mubr.f32.gmra.mxu0 %v407
      %v475 = vpop.f32.mrf.mxu0
      %v476 = vadd.f32 %v372, %v475
      %v477 = vpop.f32.mrf.mxu0
      %v478 = vadd.f32 %v372, %v477
      %479 = vdwg.mxu0
      %480 = vst [vmem:[#allocation3] sm:$0xff] %v476
      %481 = vst [vmem:[#allocation3 + $0x8] sm:$0xff] %v478
      %v482 = vld [vmem:[#allocation2 + $0x10] sm:$0xff]
      %v483 = vld [vmem:[#allocation2 + $0x18] sm:$0xff]
      %v484 = vld [vmem:[#allocation2 + $0x20] sm:$0xff]
      %488 = vrot.lane.b32.xlu0 %v482, 126
      %v489 = vpop.permute.xlu0 %488
      %490 = vrot.lane.b32.xlu0 %v483, 126
      %v491 = vpop.permute.xlu0 %490
      %492 = vrot.lane.b32.xlu0 %v484, 126
      %v493 = vpop.permute.xlu0 %492
      %v494 = vsel %vm360, %v489, %v491
      %v495 = vsel %vm360, %v491, %v493
      %496 = vrot.lane.b32.xlu0 %v483, 124
      %v497 = vpop.permute.xlu0 %496
      %498 = vrot.lane.b32.xlu0 %v484, 124
      %v499 = vpop.permute.xlu0 %498
      %v500 = vsel %vm367, %v497, %v499
      %501 = vrot.lane.b32.xlu0 %v482, 4
      %v502 = vpop.permute.xlu0 %501
      %503 = vrot.lane.b32.xlu0 %v483, 4
      %v504 = vpop.permute.xlu0 %503
      %505 = vrot.lane.b32.xlu0 %v484, 4
      %v506 = vpop.permute.xlu0 %505
      %507 = vrot.lane.b32.xlu0 %v494, 4
      %v508 = vpop.permute.xlu0 %507
      %509 = vrot.lane.b32.xlu0 %v495, 4
      %v510 = vpop.permute.xlu0 %509
      %511 = vrot.lane.b32.xlu0 %v493, 4
      %v512 = vpop.permute.xlu0 %511
      %513 = vrot.lane.b32.xlu0 %v497, 4
      %v514 = vpop.permute.xlu0 %513
      %515 = vrot.lane.b32.xlu0 %v500, 4
      %v516 = vpop.permute.xlu0 %515
      %517 = vrot.lane.b32.xlu0 %v499, 4
      %v518 = vpop.permute.xlu0 %517
      %v519 = vsel %vm392, %v502, %v504
      %v520 = vsel %vm392, %v504, %v506
      %v521 = vsel %vm392, %v508, %v510
      %v522 = vsel %vm392, %v510, %v512
      %v523 = vsel %vm392, %v514, %v516
      %v524 = vsel %vm392, %v516, %v518
      %531 = vmatprep.subr.mxu0 0.0
      %532 = vmatpush1.msra.mxu0 0.0
      %533 = vmatprep.subr.mxu0 0.0
      %534 = vmatpush1.msra.mxu0 0.0
      %535 = vmatprep.subr.mxu0 0.0
      %536 = vmatpush1.msra.mxu0 0.0
      %537 = vmatprep.subr.mxu0 0.0
      %538 = vmatpush1.msra.mxu0 0.0
      %539 = vmatprep.subr.mxu0 0.0
      %540 = vmatpush1.msra.mxu0 0.0
      %541 = vmatprep.subr.mxu0 0.0
      %542 = vmatpush1.msra.mxu0 0.0
      %543 = vmatprep.subr.mxu0 0.0
      %544 = vmatpush1.msra.mxu0 0.0
      %545 = vmatprep.subr.mxu0 0.0
      %546 = vmatpush1.msra.mxu0 0.0
      %547 = vmatprep.subr.mxu0 0.0
      %548 = vmatpush1.msra.mxu0 0.0
      %549 = vmatprep.subr.mxu0 0.0
      %550 = vmatpush1.msra.mxu0 0.0
      %551 = vmatprep.subr.mxu0 0.0
      %552 = vmatpush1.msra.mxu0 0.0
      %553 = vmatprep.subr.mxu0 0.0
      %554 = vmatpush1.msra.mxu0 0.0
      %555 = vmatprep.subr.mxu0 0.0
      %556 = vmatpush1.msra.mxu0 0.0
      %557 = vmatprep.subr.mxu0 %v524
      %558 = vmatpush1.msra.mxu0 %v523
      %559 = vmatprep.subr.mxu0 %v522
      %560 = vmatpush1.msra.mxu0 %v521
      %561 = vmatprep.subr.mxu0 %v520
      %562 = vmatpush1.msra.mxu0 %v519
      %563 = vmatprep.subr.mxu0 0.0
      %564 = vmatpush2.msra.mxu0 0.0
      %565 = vmatprep.subr.mxu0 0.0
      %566 = vmatpush2.msra.mxu0 0.0
      %567 = vmatprep.subr.mxu0 0.0
      %568 = vmatpush2.msra.mxu0 0.0
      %569 = vmatprep.subr.mxu0 0.0
      %570 = vmatpush2.msra.mxu0 0.0
      %571 = vmatprep.subr.mxu0 0.0
      %572 = vmatpush2.msra.mxu0 0.0
      %573 = vmatprep.subr.mxu0 0.0
      %574 = vmatpush2.msra.mxu0 0.0
      %575 = vmatprep.subr.mxu0 0.0
      %576 = vmatpush2.msra.mxu0 0.0
      %577 = vmatprep.subr.mxu0 0.0
      %578 = vmatpush2.msra.mxu0 0.0
      %579 = vmatprep.subr.mxu0 0.0
      %580 = vmatpush2.msra.mxu0 0.0
      %581 = vmatprep.subr.mxu0 0.0
      %582 = vmatpush2.msra.mxu0 0.0
      %583 = vmatprep.subr.mxu0 0.0
      %584 = vmatpush2.msra.mxu0 0.0
      %585 = vmatprep.subr.mxu0 0.0
      %586 = vmatpush2.msra.mxu0 0.0
      %587 = vmatprep.subr.mxu0 0.0
      %588 = vmatpush2.msra.mxu0 0.0
      %589 = vmatprep.subr.mxu0 0.0
      %590 = vmatpush2.msra.mxu0 0.0
      %591 = vmatprep.subr.mxu0 0.0
      %592 = vmatpush2.msra.mxu0 0.0
      %593 = vmatprep.subr.mxu0 0.0
      %594 = vmatpush2.msra.mxu0 0.0
      %595 = vmatprep.mubr.f32.mxu0 0.0
      %596 = vmatmul.mubr.f32.gmra.mxu0 %v407
      %v597 = vpop.f32.mrf.mxu0
      %v598 = vadd.f32 %v372, %v597
      %v599 = vpop.f32.mrf.mxu0
      %v600 = vadd.f32 %v372, %v599
      %601 = vdwg.mxu0
      %602 = vst [vmem:[#allocation3 + $0x10] sm:$0xff] %v598
      %603 = vst [vmem:[#allocation3 + $0x18] sm:$0xff] %v600
      %p604 = scmp.eq.s32.totalorder %s22, 0
      // Predicated region
      $region45: #{model_forward.1} parent=43 // pred_check
        %p605 = pneg %p604
      $region46: #{model_forward.1} parent=43 // pred_check_branch
        %607 = sbr.rel (%p605) target = $region48
      $region47: #{model_forward.1} parent=43 // pred_region
        %608 = vst [vmem:[#allocation3] sm:$0xff] 0.0
        %609 = vst [vmem:[#allocation3 + $0x8] sm:$0xff] 0.0
      $region48: #{model_forward.1} parent=43 // pred_fallthru
        _
      %v610 = vld [vmem:[#allocation3 + $0x8] sm:$0xff]
      %v611 = vld [vmem:[#allocation3 + $0x10] sm:$0xff]
      %v612 = vld [vmem:[#allocation3 + $0x18] sm:$0xff]
      %616 = vrot.lane.b32.xlu0 %v610, 126
      %v617 = vpop.permute.xlu0 %616
      %618 = vrot.lane.b32.xlu0 %v611, 126
      %v619 = vpop.permute.xlu0 %618
      %620 = vrot.lane.b32.xlu0 %v612, 126
      %v621 = vpop.permute.xlu0 %620
      %v622 = vsel %vm360, %v617, %v619
      %v623 = vsel %vm360, %v619, %v621
      %624 = vrot.lane.b32.xlu0 %v611, 124
      %v625 = vpop.permute.xlu0 %624
      %626 = vrot.lane.b32.xlu0 %v612, 124
      %v627 = vpop.permute.xlu0 %626
      %v628 = vsel %vm367, %v625, %v627
      %630 = vset.pattern.permute.xlu0 0
      %631 = vperm.xlu0 %630, %v347
      %v632 = vpop.permute.xlu0 %631
      %634 = vrot.lane.b32.xlu0 %v610, 4
      %v635 = vpop.permute.xlu0 %634
      %636 = vrot.lane.b32.xlu0 %v611, 4
      %v637 = vpop.permute.xlu0 %636
      %638 = vrot.lane.b32.xlu0 %v612, 4
      %v639 = vpop.permute.xlu0 %638
      %640 = vrot.lane.b32.xlu0 %v622, 4
      %v641 = vpop.permute.xlu0 %640
      %642 = vrot.lane.b32.xlu0 %v623, 4
      %v643 = vpop.permute.xlu0 %642
      %644 = vrot.lane.b32.xlu0 %v621, 4
      %v645 = vpop.permute.xlu0 %644
      %646 = vrot.lane.b32.xlu0 %v625, 4
      %v647 = vpop.permute.xlu0 %646
      %648 = vrot.lane.b32.xlu0 %v628, 4
      %v649 = vpop.permute.xlu0 %648
      %650 = vrot.lane.b32.xlu0 %v627, 4
      %v651 = vpop.permute.xlu0 %650
      %v652 = vsel %vm392, %v635, %v637
      %v653 = vsel %vm392, %v637, %v639
      %v654 = vsel %vm392, %v641, %v643
      %v655 = vsel %vm392, %v643, %v645
      %v656 = vsel %vm392, %v647, %v649
      %v657 = vsel %vm392, %v649, %v651
      %v665 = vsel %vm405, %v346, 0
      %667 = vmatprep.subr.mxu0 0.0
      %668 = vmatpush1.msra.mxu0 0.0
      %669 = vmatprep.subr.mxu0 0.0
      %670 = vmatpush1.msra.mxu0 0.0
      %671 = vmatprep.subr.mxu0 0.0
      %672 = vmatpush1.msra.mxu0 0.0
      %673 = vmatprep.subr.mxu0 0.0
      %674 = vmatpush1.msra.mxu0 0.0
      %675 = vmatprep.subr.mxu0 0.0
      %676 = vmatpush1.msra.mxu0 0.0
      %677 = vmatprep.subr.mxu0 0.0
      %678 = vmatpush1.msra.mxu0 0.0
      %679 = vmatprep.subr.mxu0 0.0
      %680 = vmatpush1.msra.mxu0 0.0
      %681 = vmatprep.subr.mxu0 0.0
      %682 = vmatpush1.msra.mxu0 0.0
      %683 = vmatprep.subr.mxu0 0.0
      %684 = vmatpush1.msra.mxu0 0.0
      %685 = vmatprep.subr.mxu0 0.0
      %686 = vmatpush1.msra.mxu0 0.0
      %687 = vmatprep.subr.mxu0 0.0
      %688 = vmatpush1.msra.mxu0 0.0
      %689 = vmatprep.subr.mxu0 0.0
      %690 = vmatpush1.msra.mxu0 0.0
      %691 = vmatprep.subr.mxu0 0.0
      %692 = vmatpush1.msra.mxu0 0.0
      %693 = vmatprep.subr.mxu0 %v657
      %694 = vmatpush1.msra.mxu0 %v656
      %695 = vmatprep.subr.mxu0 %v655
      %696 = vmatpush1.msra.mxu0 %v654
      %697 = vmatprep.subr.mxu0 %v653
      %698 = vmatpush1.msra.mxu0 %v652
      %699 = vmatprep.subr.mxu0 0.0
      %700 = vmatpush2.msra.mxu0 0.0
      %701 = vmatprep.subr.mxu0 0.0
      %702 = vmatpush2.msra.mxu0 0.0
      %703 = vmatprep.subr.mxu0 0.0
      %704 = vmatpush2.msra.mxu0 0.0
      %705 = vmatprep.subr.mxu0 0.0
      %706 = vmatpush2.msra.mxu0 0.0
      %707 = vmatprep.subr.mxu0 0.0
      %708 = vmatpush2.msra.mxu0 0.0
      %709 = vmatprep.subr.mxu0 0.0
      %710 = vmatpush2.msra.mxu0 0.0
      %711 = vmatprep.subr.mxu0 0.0
      %712 = vmatpush2.msra.mxu0 0.0
      %713 = vmatprep.subr.mxu0 0.0
      %714 = vmatpush2.msra.mxu0 0.0
      %715 = vmatprep.subr.mxu0 0.0
      %716 = vmatpush2.msra.mxu0 0.0
      %717 = vmatprep.subr.mxu0 0.0
      %718 = vmatpush2.msra.mxu0 0.0
      %719 = vmatprep.subr.mxu0 0.0
      %720 = vmatpush2.msra.mxu0 0.0
      %721 = vmatprep.subr.mxu0 0.0
      %722 = vmatpush2.msra.mxu0 0.0
      %723 = vmatprep.subr.mxu0 0.0
      %724 = vmatpush2.msra.mxu0 0.0
      %725 = vmatprep.subr.mxu0 0.0
      %726 = vmatpush2.msra.mxu0 0.0
      %727 = vmatprep.subr.mxu0 0.0
      %728 = vmatpush2.msra.mxu0 0.0
      %729 = vmatprep.subr.mxu0 0.0
      %730 = vmatpush2.msra.mxu0 0.0
      %731 = vmatprep.mubr.f32.mxu0 0.0
      %732 = vmatmul.mubr.f32.gmra.mxu0 %v665
      %v733 = vpop.f32.mrf.mxu0
      %v734 = vadd.f32 %v632, %v733
      %v735 = vpop.f32.mrf.mxu0
      %v736 = vadd.f32 %v632, %v735
      %737 = vdwg.mxu0
      %738 = vst [vmem:[%s323] sm:$0xff] %v734
      %739 = vst [vmem:[%s323 + $0x8] sm:$0xff] %v736
      %s740 = smul.u32 2, %s22
      %p741 = scmp.lt.s32.totalorder %s21, 1
      %s742 = scalar_select %p741, %s21, 1
      %p743 = scmp.lt.s32.totalorder %s740, 1
      %s744 = scalar_select %p743, %s740, 1
      %s745 = smul.addr %s742, 2
      %s746 = sadd.s32 %s744, %s745
      %s747 = smul.addr %s746, 8
      %s748 = scalar_lea.vmem %s6, %s747
      // Predicated region
      $region49: #{model_forward.1} parent=43 // pred_check
        %p749 = pneg %p189
      $region50: #{model_forward.1} parent=43 // pred_check_branch
        %751 = sbr.rel (%p749) target = $region52
      $region51: #{model_forward.1} parent=43 // pred_region
        %s752 = smul.u32 2, %s22
      $region52: #{model_forward.1} parent=43 // pred_fallthru
        _
    $region44: #{model_forward.1} parent=5 // pred_fallthru
      _
    %p753 = scmp.le.s32.totalorder 2, %s12
    // Predicated region
    $region53: #{model_forward.1} parent=5 // pred_check
      %p754 = pneg %p753
    $region54: #{model_forward.1} parent=5 // pred_check_branch
      %756 = sbr.rel (%p754) target = $region56
    $region55: #{model_forward.1} parent=5 // pred_region
      %s757 = ssub.s32 %s12, 2
      // Predicated region
      $region57: #{model_forward.1} parent=55 // pred_check
        %p758 = pneg %p195
      $region58: #{model_forward.1} parent=55 // pred_check_branch
        %760 = sbr.rel (%p758) target = $region60
      $region59: #{model_forward.1} parent=55 // pred_region
        %s761 = smul.u32 2, %s24
        %p762 = scmp.lt.s32.totalorder %s23, 1
        %s763 = scalar_select %p762, %s23, 1
        %p764 = scmp.lt.s32.totalorder %s761, 1
        %s765 = scalar_select %p764, %s761, 1
        %s766 = smul.addr %s763, 2
        %s767 = sadd.s32 %s765, %s766
        %s768 = smul.addr %s767, 8
        %s769 = scalar_lea.vmem %s6, %s768
      $region60: #{model_forward.1} parent=55 // pred_fallthru
        _
    $region56: #{model_forward.1} parent=5 // pred_fallthru
      _
  $region6: #{model_forward.1} parent=0 // loop_footer
    %s16 = sadd.s32 1, %s12
  $region7: #{model_forward.1} parent=0 // loop_footer_branch
    %11 = sbr.rel target = $region3
  $region8: #{model_forward.1} parent=0 // loop_exit
    _

</llo_original>
